<compile_context>
chip_gen: v5e
topology: v5e:2x2
jax: 0.10.0
libtpu: 0.0.40
codegen_flags: <defaults>
</compile_context>

<pallas_src>
import functools

import jax
import jax.numpy as jnp
import numpy as np
from jax.experimental import pallas as pl
from jax.experimental.pallas import tpu as pltpu


# ---------------------------------------------------------------------------
# Fused kernel: KL loss (W-dependent part) + sim score + pre_len replication
# ---------------------------------------------------------------------------
def fused_kernel(tlogt_ref, w_ref, t_ref, le_ref, de_ref,
                 pred_ref, loss_ref, *, pre_len):
    w = w_ref[...]                                                  # [E, D] f32

    # recon = W @ W.T on the MXU, contracting the feature dim of both operands
    # (no explicit transpose is ever emitted).
    recon = jax.lax.dot_general(
        w, w, (((1,), (1,)), ((), ())),
        preferred_element_type=jnp.float32)                         # [E, E]

    # Row-softmax of recon fused with the sum(t * p) reduction:
    #   sum_ij t_ij * p_ij = sum_i ( sum_j t_ij * e_ij ) / ( sum_j e_ij )
    m = jnp.max(recon, axis=1, keepdims=True)                       # [E, 1]
    e = jnp.exp(recon - m)                                          # [E, E]
    row_e = jnp.sum(e, axis=1, keepdims=True)                       # [E, 1]
    row_te = jnp.sum(t_ref[...] * e, axis=1, keepdims=True)         # [E, 1]
    tp_sum = jnp.sum(row_te / row_e)

    # KLDivLoss('batchmean') with the module's (probability) input:
    #   loss = ( sum(t*log t) - sum(t*p) ) / E
    E = w.shape[0]
    loss_ref[0, 0] = (tlogt_ref[0, 0] - tp_sum) / jnp.float32(E)

    # sim = (link_embs + dir_embs) @ W.T  -> one MXU matmul, then a single
    # lane-dense store of the pre_len-fold replication.
    x = le_ref[...] + de_ref[...]                                   # [B, D]
    sim = jax.lax.dot_general(
        x, w, (((1,), (1,)), ((), ())),
        preferred_element_type=jnp.float32)                         # [B, E]
    pred_ref[...] = jnp.concatenate([sim] * pre_len, axis=-1)       # [B, E*pre_len]


# ---------------------------------------------------------------------------
# Wrapper
# ---------------------------------------------------------------------------
def rnn_forward(link_w, dir_w, TM, edge_A, inputs, directions,
                pre_len, direction, key):
    E_p1, D = link_w.shape
    E = E_p1 - 1
    B = inputs.shape[0]

    W = link_w[1:, :]                                               # [E, D]

    # ---- constant target (depends only on TM / edge_A, i.e. module constants;
    #      in training this is one-time work, hoisted out of the kernel) ------
    tm_p = jax.nn.softmax(TM, axis=1)
    t = tm_p * edge_A.astype(jnp.float32) + jnp.eye(E, dtype=jnp.float32)
    safe_t = jnp.where(t > 0.0, t, 1.0)
    tlogt_sum = jnp.sum(jnp.where(t > 0.0, t * jnp.log(safe_t), 0.0))
    tlogt_sum = tlogt_sum.reshape(1, 1).astype(jnp.float32)

    # ---- embedding lookups (gather glue, plain JAX) ------------------------
    link_embs = jnp.take(link_w, inputs[:, -1], axis=0)             # [B, D]
    dir_embs = jnp.take(dir_w, directions[:, -1], axis=0)           # [B, D]

    # ---- single fused pallas_call: loss + pred -----------------------------
    # (At E=128 everything is one tile; if E ever scales past ~1.5-2K the loss
    #  part should be row-tiled with a "parallel" grid axis instead.)
    pred, loss = pl.pallas_call(
        functools.partial(fused_kernel, pre_len=pre_len),
        out_shape=(
            jax.ShapeDtypeStruct((B, E * pre_len), jnp.float32),
            jax.ShapeDtypeStruct((1, 1), jnp.float32),
        ),
        in_specs=[
            pl.BlockSpec(memory_space=pltpu.SMEM),                  # tlogt_sum
            pl.BlockSpec((E, D), lambda: (0, 0)),                   # W
            pl.BlockSpec((E, E), lambda: (0, 0)),                   # t
            pl.BlockSpec((B, D), lambda: (0, 0)),                   # link_embs
            pl.BlockSpec((B, D), lambda: (0, 0)),                   # dir_embs
        ],
        out_specs=(
            pl.BlockSpec((B, E * pre_len), lambda: (0, 0)),         # pred
            pl.BlockSpec(memory_space=pltpu.SMEM),                  # loss
        ),
    )(tlogt_sum, W, t, link_embs, dir_embs)

    loss = loss[0, 0]

    # pred_d = torch.rand(B, direction * pre_len)  (random glue, plain JAX)
    pred_d = jax.random.uniform(key, (B, direction * pre_len), dtype=jnp.float32)

    return pred, pred_d, loss


# ---------------------------------------------------------------------------
# Pure-JAX reference for correctness checking
# ---------------------------------------------------------------------------
def rnn_forward_ref(link_w, dir_w, TM, edge_A, inputs, directions, pre_len):
    E = link_w.shape[0] - 1
    W = link_w[1:, :]
    recon = W @ W.T
    p = jax.nn.softmax(recon, axis=1)
    t = jax.nn.softmax(TM, axis=1) * edge_A.astype(jnp.float32) + jnp.eye(E)
    tlogt = jnp.where(t > 0.0, t * jnp.log(jnp.where(t > 0.0, t, 1.0)), 0.0)
    loss = jnp.sum(tlogt - t * p) / E
    x = (jnp.take(link_w, inputs[:, -1], axis=0)
         + jnp.take(dir_w, directions[:, -1], axis=0))
    sim = x @ W.T
    pred = jnp.tile(sim, (1, pre_len))
    return pred, loss


if __name__ == "__main__":
    # small config consistent with the module
    num_edges = 128          # E
    edge_dim = 32            # D  (== direction_dim so embeddings can be added)
    direction = 8
    pre_len = 4
    batch_size = 8
    seq_len = 8

    key = jax.random.PRNGKey(0)
    k1, k2, k3, k4, k5, k6, k7 = jax.random.split(key, 7)

    # deterministic "Embedding" weights (N(0,1), padding row 0 zeroed)
    link_w = jax.random.normal(k1, (num_edges + 1, edge_dim), dtype=jnp.float32)
    link_w = link_w.at[0].set(0.0)
    dir_w = jax.random.normal(k2, (direction + 1, edge_dim), dtype=jnp.float32)
    dir_w = dir_w.at[0].set(0.0)

    # graph-side constants
    TM = jax.random.uniform(k3, (num_edges, num_edges), dtype=jnp.float32)
    edge_A = (jax.random.uniform(k4, (num_edges, num_edges)) > 0.5).astype(jnp.int32)

    # batch inputs
    inputs = jax.random.randint(k5, (batch_size, seq_len), 1, num_edges + 1,
                                dtype=jnp.int32)
    directions = jax.random.randint(k6, (batch_size, seq_len), 1, direction + 1,
                                    dtype=jnp.int32)

    pred, pred_d, loss = rnn_forward(link_w, dir_w, TM, edge_A, inputs,
                                     directions, pre_len, direction, k7)
    jax.block_until_ready((pred, pred_d, loss))

    # check against pure-JAX reference (pred_d is intentionally fresh noise,
    # matching torch.rand, and is only shape-checked)
    pred_ref, loss_ref = rnn_forward_ref(link_w, dir_w, TM, edge_A, inputs,
                                         directions, pre_len)
    assert pred.shape == (batch_size, num_edges * pre_len)
    assert pred_d.shape == (batch_size, direction * pre_len)
    np.testing.assert_allclose(np.asarray(pred), np.asarray(pred_ref),
                               rtol=1e-5, atol=1e-5)
    np.testing.assert_allclose(float(loss), float(loss_ref), rtol=1e-4, atol=1e-4)

    print("KERNEL_OK")
</pallas_src>

<mosaic_0001>
module attributes {stable_mosaic.version = 11 : i64} {
  func.func @fused_kernel(%arg0: memref<1x1xf32, #tpu.memory_space<smem>>, %arg1: memref<128x32xf32, #tpu.memory_space<vmem>>, %arg2: memref<128x128xf32, #tpu.memory_space<vmem>>, %arg3: memref<8x32xf32, #tpu.memory_space<vmem>>, %arg4: memref<8x32xf32, #tpu.memory_space<vmem>>, %arg5: memref<8x512xf32, #tpu.memory_space<vmem>>, %arg6: memref<1x1xf32, #tpu.memory_space<smem>>) attributes {dimension_semantics = [], scalar_prefetch = 0 : i64, scratch_operands = 0 : i64, tpu.core_type = #tpu.core_type<tc>} {
    %c0 = arith.constant 0 : index
    %c0_0 = arith.constant 0 : index
    %0 = vector.load %arg1[%c0, %c0_0] : memref<128x32xf32, #tpu.memory_space<vmem>>, vector<128x32xf32>
    %cst = arith.constant dense<0.000000e+00> : vector<128x128xf32>
    %1 = tpu.matmul %0, %0, %cst {dimension_numbers = #tpu.dot_dimension_numbers<[1], [1], [0], [0], [0, 0, 1, 0], [], []>} : vector<128x32xf32>, vector<128x32xf32>, vector<128x128xf32> -> vector<128x128xf32>
    %cst_1 = arith.constant dense<0xFF800000> : vector<128xf32>
    %2 = vector.multi_reduction <maximumf>, %1, %cst_1 [1] : vector<128x128xf32> to vector<128xf32>
    %3 = vector.shape_cast %2 : vector<128xf32> to vector<128x1xf32>
    %4 = vector.broadcast %3 : vector<128x1xf32> to vector<128x128xf32>
    %5 = arith.subf %1, %4 : vector<128x128xf32>
    %6 = math.exp %5 : vector<128x128xf32>
    %cst_2 = arith.constant dense<0.000000e+00> : vector<128xf32>
    %7 = vector.multi_reduction <add>, %6, %cst_2 [1] : vector<128x128xf32> to vector<128xf32>
    %8 = vector.shape_cast %7 : vector<128xf32> to vector<128x1xf32>
    %c0_3 = arith.constant 0 : index
    %c0_4 = arith.constant 0 : index
    %9 = vector.load %arg2[%c0_3, %c0_4] : memref<128x128xf32, #tpu.memory_space<vmem>>, vector<128x128xf32>
    %10 = arith.mulf %9, %6 : vector<128x128xf32>
    %cst_5 = arith.constant dense<0.000000e+00> : vector<128xf32>
    %11 = vector.multi_reduction <add>, %10, %cst_5 [1] : vector<128x128xf32> to vector<128xf32>
    %12 = vector.shape_cast %11 : vector<128xf32> to vector<128x1xf32>
    %13 = arith.divf %12, %8 : vector<128x1xf32>
    %14 = vector.shape_cast %13 : vector<128x1xf32> to vector<1x128x1xf32>
    %cst_6 = arith.constant dense<0.000000e+00> : vector<1xf32>
    %15 = vector.multi_reduction <add>, %14, %cst_6 [1, 2] : vector<1x128x1xf32> to vector<1xf32>
    %16 = vector.shape_cast %15 : vector<1xf32> to vector<1x1x1xf32>
    %17 = vector.extract %16[0, 0, 0] : f32 from vector<1x1x1xf32>
    %c0_7 = arith.constant 0 : index
    %c0_8 = arith.constant 0 : index
    %18 = memref.load %arg0[%c0_7, %c0_8] : memref<1x1xf32, #tpu.memory_space<smem>>
    %19 = arith.subf %18, %17 : f32
    %cst_9 = arith.constant 1.280000e+02 : f32
    %20 = arith.divf %19, %cst_9 : f32
    %c0_10 = arith.constant 0 : index
    %c0_11 = arith.constant 0 : index
    %21 = memref.load %arg6[%c0_10, %c0_11] : memref<1x1xf32, #tpu.memory_space<smem>>
    memref.store %20, %arg6[%c0_10, %c0_11] : memref<1x1xf32, #tpu.memory_space<smem>>
    %c0_12 = arith.constant 0 : index
    %c0_13 = arith.constant 0 : index
    %22 = vector.load %arg3[%c0_12, %c0_13] : memref<8x32xf32, #tpu.memory_space<vmem>>, vector<8x32xf32>
    %c0_14 = arith.constant 0 : index
    %c0_15 = arith.constant 0 : index
    %23 = vector.load %arg4[%c0_14, %c0_15] : memref<8x32xf32, #tpu.memory_space<vmem>>, vector<8x32xf32>
    %24 = arith.addf %22, %23 : vector<8x32xf32>
    %cst_16 = arith.constant dense<0.000000e+00> : vector<8x128xf32>
    %25 = tpu.matmul %24, %0, %cst_16 {dimension_numbers = #tpu.dot_dimension_numbers<[1], [1], [0], [0], [0, 0, 1, 0], [], []>} : vector<8x32xf32>, vector<128x32xf32>, vector<8x128xf32> -> vector<8x128xf32>
    %26 = tpu.concatenate %25, %25, %25, %25 in 1 : vector<8x128xf32>, vector<8x128xf32>, vector<8x128xf32>, vector<8x128xf32> -> vector<8x512xf32>
    %c0_17 = arith.constant 0 : index
    %c0_18 = arith.constant 0 : index
    %27 = vector.load %arg5[%c0_17, %c0_18] : memref<8x512xf32, #tpu.memory_space<vmem>>, vector<8x512xf32>
    tpu.vector_store %arg5[%c0_17, %c0_18], %26 {strides = array<i32>} : memref<8x512xf32, #tpu.memory_space<vmem>>, vector<8x512xf32>,
    return
  }
}

</mosaic_0001>

<llo_original>
// kernel: tpu_custom_call.1
$region0: #{tpu_custom_call.1}
  #allocation0 [shape = 'u32[]', space=smem, size = 0x4, offset = 0x4, fixed_abs, tag = 'smem constant byte address 0x4 - core index']
  #allocation1 [shape = 'u32[72,128]{1,0:T(1,128)}', space=vmem, size = 0x9000, scoped, tag = 'internal scratch']
  #allocation2 [shape = 'f32[1,1]{1,0:T(1,128)S(6)}', space=smem, size = 0x200, scoped, tag = 'scoped memory for tpu_custom_call.1']
  %s0 = inlined_call_operand.<no memory space> [shape: f32[1,1], index: 0, kind: input, shape index: {}]
  %s1 = inlined_call_operand.vmem [shape: f32[128,32], index: 1, kind: input, shape index: {}]
  %s2 = inlined_call_operand.vmem [shape: f32[128,128], index: 2, kind: input, shape index: {}]
  %s3 = inlined_call_operand.vmem [shape: f32[8,32], index: 3, kind: input, shape index: {}]
  %s4 = inlined_call_operand.vmem [shape: f32[8,32], index: 4, kind: input, shape index: {}]
  %s5 = inlined_call_operand.hbm [shape: f32[8,512], index: 5, kind: output, shape index: {0}]
  %s6 = inlined_call_operand.hbm [shape: f32[1,1], index: 6, kind: output, shape index: {1}]
  %7 = xla_tuple %s5, %s6
  %s8 = sld [smem:[#allocation0]]
  $region38: #{tpu_custom_call.1} parent=0
    _
  %s10 = ssub.s32 1, %s8
  %s11 = scalar_select 0, %s10, %s8
  %12 = sst [smem:[#allocation2]] %s0
  $region1: #{tpu_custom_call.1} parent=0
    #allocation3 [shape = 'u8[16384]{0}', space=vmem, size = 0x4000, scoped, tag = 'output window, operand 0, single buffered']
    #allocation4 [shape = 's32[1]{0}', space=sflag, size = 0x4, scoped, tag = 'scoped memory for tpu_custom_call.1']
    #allocation5 [shape = 's32[1]{0}', space=sflag, size = 0x4, scoped, tag = 'scoped memory for tpu_custom_call.1']
    #allocation6 [shape = 'u8[512]{0}', space=smem, size = 0x200, scoped, tag = 'output window, operand 1, single buffered']
    %13 = vsyncpa [#allocation4], 0
    %14 = vsyncpa [#allocation5], 0
    // Predicated region
    $region2: #{tpu_custom_call.1} parent=1 // pred_check
      _
    $region3: #{tpu_custom_call.1} parent=1 // pred_check_branch
      %16 = sbr.rel (0) target = $region5
    $region4: #{tpu_custom_call.1} parent=1 // pred_region
      _
    $region5: #{tpu_custom_call.1} parent=1 // pred_fallthru
      _
    // Predicated region
    $region6: #{tpu_custom_call.1} parent=1 // pred_check
      _
    $region7: #{tpu_custom_call.1} parent=1 // pred_check_branch
      %18 = sbr.rel (0) target = $region9
    $region8: #{tpu_custom_call.1} parent=1 // pred_region
      _
    $region9: #{tpu_custom_call.1} parent=1 // pred_fallthru
      _
    // Predicated region
    $region10: #{tpu_custom_call.1} parent=1 // pred_check
      _
    $region11: #{tpu_custom_call.1} parent=1 // pred_check_branch
      %20 = sbr.rel (0) target = $region13
    $region12: #{tpu_custom_call.1} parent=1 // pred_region
      _
    $region13: #{tpu_custom_call.1} parent=1 // pred_fallthru
      _
    // Predicated region
    $region14: #{tpu_custom_call.1} parent=1 // pred_check
      _
    $region15: #{tpu_custom_call.1} parent=1 // pred_check_branch
      %22 = sbr.rel (0) target = $region17
    $region16: #{tpu_custom_call.1} parent=1 // pred_region
      _
    $region17: #{tpu_custom_call.1} parent=1 // pred_fallthru
      _
    // Predicated region
    $region18: #{tpu_custom_call.1} parent=1 // pred_check
      _
    $region19: #{tpu_custom_call.1} parent=1 // pred_check_branch
      %24 = sbr.rel (0) target = $region21
    $region20: #{tpu_custom_call.1} parent=1 // pred_region
      _
    $region21: #{tpu_custom_call.1} parent=1 // pred_fallthru
      _
    %v25 = vld [vmem:[%s1] sm:$0xff]
    %v26 = vld [vmem:[%s1 + $0x8] sm:$0xff]
    %v27 = vld [vmem:[%s1 + $0x10] sm:$0xff]
    %v28 = vld [vmem:[%s1 + $0x18] sm:$0xff]
    %v29 = vld [vmem:[%s1 + $0x20] sm:$0xff]
    %v30 = vld [vmem:[%s1 + $0x28] sm:$0xff]
    %v31 = vld [vmem:[%s1 + $0x30] sm:$0xff]
    %v32 = vld [vmem:[%s1 + $0x38] sm:$0xff]
    %v33 = vld [vmem:[%s1 + $0x40] sm:$0xff]
    %v34 = vld [vmem:[%s1 + $0x48] sm:$0xff]
    %v35 = vld [vmem:[%s1 + $0x50] sm:$0xff]
    %v36 = vld [vmem:[%s1 + $0x58] sm:$0xff]
    %v37 = vld [vmem:[%s1 + $0x60] sm:$0xff]
    %v38 = vld [vmem:[%s1 + $0x68] sm:$0xff]
    %v39 = vld [vmem:[%s1 + $0x70] sm:$0xff]
    %v40 = vld [vmem:[%s1 + $0x78] sm:$0xff]
    %vm41 = vcmask 261120
    %v43 = vsel %vm41, %v25, 0
    %v46 = vsel %vm41, %v26, 0
    %v49 = vsel %vm41, %v27, 0
    %v52 = vsel %vm41, %v28, 0
    %v55 = vsel %vm41, %v29, 0
    %v58 = vsel %vm41, %v30, 0
    %v61 = vsel %vm41, %v31, 0
    %v64 = vsel %vm41, %v32, 0
    %v67 = vsel %vm41, %v33, 0
    %v70 = vsel %vm41, %v34, 0
    %v73 = vsel %vm41, %v35, 0
    %v76 = vsel %vm41, %v36, 0
    %v79 = vsel %vm41, %v37, 0
    %v82 = vsel %vm41, %v38, 0
    %v85 = vsel %vm41, %v39, 0
    %v88 = vsel %vm41, %v40, 0
    %90 = vmatpush.xpose.msra.mxu0 %v88
    %91 = vmatpush.xpose.msra.mxu0 %v85
    %92 = vmatpush.xpose.msra.mxu0 %v82
    %93 = vmatpush.xpose.msra.mxu0 %v79
    %94 = vmatpush.xpose.msra.mxu0 %v76
    %95 = vmatpush.xpose.msra.mxu0 %v73
    %96 = vmatpush.xpose.msra.mxu0 %v70
    %97 = vmatpush.xpose.msra.mxu0 %v67
    %98 = vmatpush.xpose.msra.mxu0 %v64
    %99 = vmatpush.xpose.msra.mxu0 %v61
    %100 = vmatpush.xpose.msra.mxu0 %v58
    %101 = vmatpush.xpose.msra.mxu0 %v55
    %102 = vmatpush.xpose.msra.mxu0 %v52
    %103 = vmatpush.xpose.msra.mxu0 %v49
    %104 = vmatpush.xpose.msra.mxu0 %v46
    %105 = vmatpush.xpose.msra.mxu0 %v43
    %106 = vmatmul.f32.gmra.mxu0 %v43
    %v107 = vpop.f32.mrf.mxu0
    %v108 = vadd.f32 0.0, %v107
    %109 = vmatmul.f32.gmra.mxu0 %v46
    %v110 = vpop.f32.mrf.mxu0
    %v111 = vadd.f32 0.0, %v110
    %112 = vmatmul.f32.gmra.mxu0 %v49
    %v113 = vpop.f32.mrf.mxu0
    %v114 = vadd.f32 0.0, %v113
    %115 = vmatmul.f32.gmra.mxu0 %v52
    %v116 = vpop.f32.mrf.mxu0
    %v117 = vadd.f32 0.0, %v116
    %118 = vmatmul.f32.gmra.mxu0 %v55
    %v119 = vpop.f32.mrf.mxu0
    %v120 = vadd.f32 0.0, %v119
    %121 = vmatmul.f32.gmra.mxu0 %v58
    %v122 = vpop.f32.mrf.mxu0
    %v123 = vadd.f32 0.0, %v122
    %124 = vmatmul.f32.gmra.mxu0 %v61
    %v125 = vpop.f32.mrf.mxu0
    %v126 = vadd.f32 0.0, %v125
    %127 = vmatmul.f32.gmra.mxu0 %v64
    %v128 = vpop.f32.mrf.mxu0
    %v129 = vadd.f32 0.0, %v128
    %130 = vmatmul.f32.gmra.mxu0 %v67
    %v131 = vpop.f32.mrf.mxu0
    %v132 = vadd.f32 0.0, %v131
    %133 = vmatmul.f32.gmra.mxu0 %v70
    %v134 = vpop.f32.mrf.mxu0
    %v135 = vadd.f32 0.0, %v134
    %136 = vmatmul.f32.gmra.mxu0 %v73
    %v137 = vpop.f32.mrf.mxu0
    %v138 = vadd.f32 0.0, %v137
    %139 = vmatmul.f32.gmra.mxu0 %v76
    %v140 = vpop.f32.mrf.mxu0
    %v141 = vadd.f32 0.0, %v140
    %142 = vmatmul.f32.gmra.mxu0 %v79
    %v143 = vpop.f32.mrf.mxu0
    %v144 = vadd.f32 0.0, %v143
    %145 = vmatmul.f32.gmra.mxu0 %v82
    %v146 = vpop.f32.mrf.mxu0
    %v147 = vadd.f32 0.0, %v146
    %148 = vmatmul.f32.gmra.mxu0 %v85
    %v149 = vpop.f32.mrf.mxu0
    %v150 = vadd.f32 0.0, %v149
    %151 = vmatmul.f32.gmra.mxu0 %v88
    %v152 = vpop.f32.mrf.mxu0
    %v153 = vadd.f32 0.0, %v152
    %154 = vdwg.mxu0
    %155 = vmax.xlane.f32.xlu0 %v108
    %v156 = vpop.xlane.xlu0 %155
    %157 = vmax.xlane.f32.xlu0 %v111
    %v158 = vpop.xlane.xlu0 %157
    %159 = vmax.xlane.f32.xlu0 %v114
    %v160 = vpop.xlane.xlu0 %159
    %161 = vmax.xlane.f32.xlu0 %v117
    %v162 = vpop.xlane.xlu0 %161
    %163 = vmax.xlane.f32.xlu0 %v120
    %v164 = vpop.xlane.xlu0 %163
    %165 = vmax.xlane.f32.xlu0 %v123
    %v166 = vpop.xlane.xlu0 %165
    %167 = vmax.xlane.f32.xlu0 %v126
    %v168 = vpop.xlane.xlu0 %167
    %169 = vmax.xlane.f32.xlu0 %v129
    %v170 = vpop.xlane.xlu0 %169
    %171 = vmax.xlane.f32.xlu0 %v132
    %v172 = vpop.xlane.xlu0 %171
    %173 = vmax.xlane.f32.xlu0 %v135
    %v174 = vpop.xlane.xlu0 %173
    %175 = vmax.xlane.f32.xlu0 %v138
    %v176 = vpop.xlane.xlu0 %175
    %177 = vmax.xlane.f32.xlu0 %v141
    %v178 = vpop.xlane.xlu0 %177
    %179 = vmax.xlane.f32.xlu0 %v144
    %v180 = vpop.xlane.xlu0 %179
    %181 = vmax.xlane.f32.xlu0 %v147
    %v182 = vpop.xlane.xlu0 %181
    %183 = vmax.xlane.f32.xlu0 %v150
    %v184 = vpop.xlane.xlu0 %183
    %185 = vmax.xlane.f32.xlu0 %v153
    %v186 = vpop.xlane.xlu0 %185
    %v187 = vsub.f32 %v108, %v156
    %v188 = vsub.f32 %v111, %v158
    %v189 = vsub.f32 %v114, %v160
    %v190 = vsub.f32 %v117, %v162
    %v191 = vsub.f32 %v120, %v164
    %v192 = vsub.f32 %v123, %v166
    %v193 = vsub.f32 %v126, %v168
    %v194 = vsub.f32 %v129, %v170
    %v195 = vsub.f32 %v132, %v172
    %v196 = vsub.f32 %v135, %v174
    %v197 = vsub.f32 %v138, %v176
    %v198 = vsub.f32 %v141, %v178
    %v199 = vsub.f32 %v144, %v180
    %v200 = vsub.f32 %v147, %v182
    %v201 = vsub.f32 %v150, %v184
    %v202 = vsub.f32 %v153, %v186
    %v203 = vmul.f32 %v187, 1.442695
    %v204 = vpow.pop %v203
    %v205 = vmul.f32 %v188, 1.442695
    %v206 = vpow.pop %v205
    %v207 = vmul.f32 %v189, 1.442695
    %v208 = vpow.pop %v207
    %v209 = vmul.f32 %v190, 1.442695
    %v210 = vpow.pop %v209
    %v211 = vmul.f32 %v191, 1.442695
    %v212 = vpow.pop %v211
    %v213 = vmul.f32 %v192, 1.442695
    %v214 = vpow.pop %v213
    %v215 = vmul.f32 %v193, 1.442695
    %v216 = vpow.pop %v215
    %v217 = vmul.f32 %v194, 1.442695
    %v218 = vpow.pop %v217
    %v219 = vmul.f32 %v195, 1.442695
    %v220 = vpow.pop %v219
    %v221 = vmul.f32 %v196, 1.442695
    %v222 = vpow.pop %v221
    %v223 = vmul.f32 %v197, 1.442695
    %v224 = vpow.pop %v223
    %v225 = vmul.f32 %v198, 1.442695
    %v226 = vpow.pop %v225
    %v227 = vmul.f32 %v199, 1.442695
    %v228 = vpow.pop %v227
    %v229 = vmul.f32 %v200, 1.442695
    %v230 = vpow.pop %v229
    %v231 = vmul.f32 %v201, 1.442695
    %v232 = vpow.pop %v231
    %v233 = vmul.f32 %v202, 1.442695
    %v234 = vpow.pop %v233
    %235 = vadd.xlane.f32.xlu0 %v204
    %v236 = vpop.xlane.xlu0 %235
    %237 = vadd.xlane.f32.xlu0 %v206
    %v238 = vpop.xlane.xlu0 %237
    %239 = vadd.xlane.f32.xlu0 %v208
    %v240 = vpop.xlane.xlu0 %239
    %241 = vadd.xlane.f32.xlu0 %v210
    %v242 = vpop.xlane.xlu0 %241
    %243 = vadd.xlane.f32.xlu0 %v212
    %v244 = vpop.xlane.xlu0 %243
    %245 = vadd.xlane.f32.xlu0 %v214
    %v246 = vpop.xlane.xlu0 %245
    %247 = vadd.xlane.f32.xlu0 %v216
    %v248 = vpop.xlane.xlu0 %247
    %249 = vadd.xlane.f32.xlu0 %v218
    %v250 = vpop.xlane.xlu0 %249
    %251 = vadd.xlane.f32.xlu0 %v220
    %v252 = vpop.xlane.xlu0 %251
    %253 = vadd.xlane.f32.xlu0 %v222
    %v254 = vpop.xlane.xlu0 %253
    %255 = vadd.xlane.f32.xlu0 %v224
    %v256 = vpop.xlane.xlu0 %255
    %257 = vadd.xlane.f32.xlu0 %v226
    %v258 = vpop.xlane.xlu0 %257
    %259 = vadd.xlane.f32.xlu0 %v228
    %v260 = vpop.xlane.xlu0 %259
    %261 = vadd.xlane.f32.xlu0 %v230
    %v262 = vpop.xlane.xlu0 %261
    %263 = vadd.xlane.f32.xlu0 %v232
    %v264 = vpop.xlane.xlu0 %263
    %265 = vadd.xlane.f32.xlu0 %v234
    %v266 = vpop.xlane.xlu0 %265
    %v267 = vld [vmem:[%s2] sm:$0xff]
    %v268 = vld [vmem:[%s2 + $0x8] sm:$0xff]
    %v269 = vld [vmem:[%s2 + $0x10] sm:$0xff]
    %v270 = vld [vmem:[%s2 + $0x18] sm:$0xff]
    %v271 = vld [vmem:[%s2 + $0x20] sm:$0xff]
    %v272 = vld [vmem:[%s2 + $0x28] sm:$0xff]
    %v273 = vld [vmem:[%s2 + $0x30] sm:$0xff]
    %v274 = vld [vmem:[%s2 + $0x38] sm:$0xff]
    %v275 = vld [vmem:[%s2 + $0x40] sm:$0xff]
    %v276 = vld [vmem:[%s2 + $0x48] sm:$0xff]
    %v277 = vld [vmem:[%s2 + $0x50] sm:$0xff]
    %v278 = vld [vmem:[%s2 + $0x58] sm:$0xff]
    %v279 = vld [vmem:[%s2 + $0x60] sm:$0xff]
    %v280 = vld [vmem:[%s2 + $0x68] sm:$0xff]
    %v281 = vld [vmem:[%s2 + $0x70] sm:$0xff]
    %v282 = vld [vmem:[%s2 + $0x78] sm:$0xff]
    %v283 = vmul.f32 %v267, %v204
    %v284 = vmul.f32 %v268, %v206
    %v285 = vmul.f32 %v269, %v208
    %v286 = vmul.f32 %v270, %v210
    %v287 = vmul.f32 %v271, %v212
    %v288 = vmul.f32 %v272, %v214
    %v289 = vmul.f32 %v273, %v216
    %v290 = vmul.f32 %v274, %v218
    %v291 = vmul.f32 %v275, %v220
    %v292 = vmul.f32 %v276, %v222
    %v293 = vmul.f32 %v277, %v224
    %v294 = vmul.f32 %v278, %v226
    %v295 = vmul.f32 %v279, %v228
    %v296 = vmul.f32 %v280, %v230
    %v297 = vmul.f32 %v281, %v232
    %v298 = vmul.f32 %v282, %v234
    %299 = vadd.xlane.f32.xlu0 %v283
    %v300 = vpop.xlane.xlu0 %299
    %301 = vadd.xlane.f32.xlu0 %v284
    %v302 = vpop.xlane.xlu0 %301
    %303 = vadd.xlane.f32.xlu0 %v285
    %v304 = vpop.xlane.xlu0 %303
    %305 = vadd.xlane.f32.xlu0 %v286
    %v306 = vpop.xlane.xlu0 %305
    %307 = vadd.xlane.f32.xlu0 %v287
    %v308 = vpop.xlane.xlu0 %307
    %309 = vadd.xlane.f32.xlu0 %v288
    %v310 = vpop.xlane.xlu0 %309
    %311 = vadd.xlane.f32.xlu0 %v289
    %v312 = vpop.xlane.xlu0 %311
    %313 = vadd.xlane.f32.xlu0 %v290
    %v314 = vpop.xlane.xlu0 %313
    %315 = vadd.xlane.f32.xlu0 %v291
    %v316 = vpop.xlane.xlu0 %315
    %317 = vadd.xlane.f32.xlu0 %v292
    %v318 = vpop.xlane.xlu0 %317
    %319 = vadd.xlane.f32.xlu0 %v293
    %v320 = vpop.xlane.xlu0 %319
    %321 = vadd.xlane.f32.xlu0 %v294
    %v322 = vpop.xlane.xlu0 %321
    %323 = vadd.xlane.f32.xlu0 %v295
    %v324 = vpop.xlane.xlu0 %323
    %325 = vadd.xlane.f32.xlu0 %v296
    %v326 = vpop.xlane.xlu0 %325
    %327 = vadd.xlane.f32.xlu0 %v297
    %v328 = vpop.xlane.xlu0 %327
    %329 = vadd.xlane.f32.xlu0 %v298
    %v330 = vpop.xlane.xlu0 %329
    %v331 = vrcp.pop %v236
    %v332 = vmul.f32 %v236, %v331
    %v333 = vsub.f32 1.0, %v332
    %v334 = vmul.f32 %v331, %v333
    %v335 = vadd.f32 %v331, %v334
    %vm336 = vweird.f32 %v236
    %vm337 = vweird.f32 %v331
    %vm338 = vmor %vm336, %vm337
    %v339 = vsel %vm338, %v331, %v335
    %v340 = vand.u32 2147483647, %v236
    %vm341 = vcmp.eq.f32.partialorder %v340, 8.507059e+37
    %v342 = vand.u32 %v236, 2147483648
    %v343 = vor.u32 1.1754944e-38, %v342
    %v344 = vsel %vm341, %v343, %v339
    %v345 = vmul.f32 %v300, %v344
    %v346 = vrcp.pop %v238
    %v347 = vmul.f32 %v238, %v346
    %v348 = vsub.f32 1.0, %v347
    %v349 = vmul.f32 %v346, %v348
    %v350 = vadd.f32 %v346, %v349
    %vm351 = vweird.f32 %v238
    %vm352 = vweird.f32 %v346
    %vm353 = vmor %vm351, %vm352
    %v354 = vsel %vm353, %v346, %v350
    %v355 = vand.u32 2147483647, %v238
    %vm356 = vcmp.eq.f32.partialorder %v355, 8.507059e+37
    %v357 = vand.u32 %v238, 2147483648
    %v358 = vor.u32 1.1754944e-38, %v357
    %v359 = vsel %vm356, %v358, %v354
    %v360 = vmul.f32 %v302, %v359
    %v361 = vrcp.pop %v240
    %v362 = vmul.f32 %v240, %v361
    %v363 = vsub.f32 1.0, %v362
    %v364 = vmul.f32 %v361, %v363
    %v365 = vadd.f32 %v361, %v364
    %vm366 = vweird.f32 %v240
    %vm367 = vweird.f32 %v361
    %vm368 = vmor %vm366, %vm367
    %v369 = vsel %vm368, %v361, %v365
    %v370 = vand.u32 2147483647, %v240
    %vm371 = vcmp.eq.f32.partialorder %v370, 8.507059e+37
    %v372 = vand.u32 %v240, 2147483648
    %v373 = vor.u32 1.1754944e-38, %v372
    %v374 = vsel %vm371, %v373, %v369
    %v375 = vmul.f32 %v304, %v374
    %v376 = vrcp.pop %v242
    %v377 = vmul.f32 %v242, %v376
    %v378 = vsub.f32 1.0, %v377
    %v379 = vmul.f32 %v376, %v378
    %v380 = vadd.f32 %v376, %v379
    %vm381 = vweird.f32 %v242
    %vm382 = vweird.f32 %v376
    %vm383 = vmor %vm381, %vm382
    %v384 = vsel %vm383, %v376, %v380
    %v385 = vand.u32 2147483647, %v242
    %vm386 = vcmp.eq.f32.partialorder %v385, 8.507059e+37
    %v387 = vand.u32 %v242, 2147483648
    %v388 = vor.u32 1.1754944e-38, %v387
    %v389 = vsel %vm386, %v388, %v384
    %v390 = vmul.f32 %v306, %v389
    %v391 = vrcp.pop %v244
    %v392 = vmul.f32 %v244, %v391
    %v393 = vsub.f32 1.0, %v392
    %v394 = vmul.f32 %v391, %v393
    %v395 = vadd.f32 %v391, %v394
    %vm396 = vweird.f32 %v244
    %vm397 = vweird.f32 %v391
    %vm398 = vmor %vm396, %vm397
    %v399 = vsel %vm398, %v391, %v395
    %v400 = vand.u32 2147483647, %v244
    %vm401 = vcmp.eq.f32.partialorder %v400, 8.507059e+37
    %v402 = vand.u32 %v244, 2147483648
    %v403 = vor.u32 1.1754944e-38, %v402
    %v404 = vsel %vm401, %v403, %v399
    %v405 = vmul.f32 %v308, %v404
    %v406 = vrcp.pop %v246
    %v407 = vmul.f32 %v246, %v406
    %v408 = vsub.f32 1.0, %v407
    %v409 = vmul.f32 %v406, %v408
    %v410 = vadd.f32 %v406, %v409
    %vm411 = vweird.f32 %v246
    %vm412 = vweird.f32 %v406
    %vm413 = vmor %vm411, %vm412
    %v414 = vsel %vm413, %v406, %v410
    %v415 = vand.u32 2147483647, %v246
    %vm416 = vcmp.eq.f32.partialorder %v415, 8.507059e+37
    %v417 = vand.u32 %v246, 2147483648
    %v418 = vor.u32 1.1754944e-38, %v417
    %v419 = vsel %vm416, %v418, %v414
    %v420 = vmul.f32 %v310, %v419
    %v421 = vrcp.pop %v248
    %v422 = vmul.f32 %v248, %v421
    %v423 = vsub.f32 1.0, %v422
    %v424 = vmul.f32 %v421, %v423
    %v425 = vadd.f32 %v421, %v424
    %vm426 = vweird.f32 %v248
    %vm427 = vweird.f32 %v421
    %vm428 = vmor %vm426, %vm427
    %v429 = vsel %vm428, %v421, %v425
    %v430 = vand.u32 2147483647, %v248
    %vm431 = vcmp.eq.f32.partialorder %v430, 8.507059e+37
    %v432 = vand.u32 %v248, 2147483648
    %v433 = vor.u32 1.1754944e-38, %v432
    %v434 = vsel %vm431, %v433, %v429
    %v435 = vmul.f32 %v312, %v434
    %v436 = vrcp.pop %v250
    %v437 = vmul.f32 %v250, %v436
    %v438 = vsub.f32 1.0, %v437
    %v439 = vmul.f32 %v436, %v438
    %v440 = vadd.f32 %v436, %v439
    %vm441 = vweird.f32 %v250
    %vm442 = vweird.f32 %v436
    %vm443 = vmor %vm441, %vm442
    %v444 = vsel %vm443, %v436, %v440
    %v445 = vand.u32 2147483647, %v250
    %vm446 = vcmp.eq.f32.partialorder %v445, 8.507059e+37
    %v447 = vand.u32 %v250, 2147483648
    %v448 = vor.u32 1.1754944e-38, %v447
    %v449 = vsel %vm446, %v448, %v444
    %v450 = vmul.f32 %v314, %v449
    %v451 = vrcp.pop %v252
    %v452 = vmul.f32 %v252, %v451
    %v453 = vsub.f32 1.0, %v452
    %v454 = vmul.f32 %v451, %v453
    %v455 = vadd.f32 %v451, %v454
    %vm456 = vweird.f32 %v252
    %vm457 = vweird.f32 %v451
    %vm458 = vmor %vm456, %vm457
    %v459 = vsel %vm458, %v451, %v455
    %v460 = vand.u32 2147483647, %v252
    %vm461 = vcmp.eq.f32.partialorder %v460, 8.507059e+37
    %v462 = vand.u32 %v252, 2147483648
    %v463 = vor.u32 1.1754944e-38, %v462
    %v464 = vsel %vm461, %v463, %v459
    %v465 = vmul.f32 %v316, %v464
    %v466 = vrcp.pop %v254
    %v467 = vmul.f32 %v254, %v466
    %v468 = vsub.f32 1.0, %v467
    %v469 = vmul.f32 %v466, %v468
    %v470 = vadd.f32 %v466, %v469
    %vm471 = vweird.f32 %v254
    %vm472 = vweird.f32 %v466
    %vm473 = vmor %vm471, %vm472
    %v474 = vsel %vm473, %v466, %v470
    %v475 = vand.u32 2147483647, %v254
    %vm476 = vcmp.eq.f32.partialorder %v475, 8.507059e+37
    %v477 = vand.u32 %v254, 2147483648
    %v478 = vor.u32 1.1754944e-38, %v477
    %v479 = vsel %vm476, %v478, %v474
    %v480 = vmul.f32 %v318, %v479
    %v481 = vrcp.pop %v256
    %v482 = vmul.f32 %v256, %v481
    %v483 = vsub.f32 1.0, %v482
    %v484 = vmul.f32 %v481, %v483
    %v485 = vadd.f32 %v481, %v484
    %vm486 = vweird.f32 %v256
    %vm487 = vweird.f32 %v481
    %vm488 = vmor %vm486, %vm487
    %v489 = vsel %vm488, %v481, %v485
    %v490 = vand.u32 2147483647, %v256
    %vm491 = vcmp.eq.f32.partialorder %v490, 8.507059e+37
    %v492 = vand.u32 %v256, 2147483648
    %v493 = vor.u32 1.1754944e-38, %v492
    %v494 = vsel %vm491, %v493, %v489
    %v495 = vmul.f32 %v320, %v494
    %v496 = vrcp.pop %v258
    %v497 = vmul.f32 %v258, %v496
    %v498 = vsub.f32 1.0, %v497
    %v499 = vmul.f32 %v496, %v498
    %v500 = vadd.f32 %v496, %v499
    %vm501 = vweird.f32 %v258
    %vm502 = vweird.f32 %v496
    %vm503 = vmor %vm501, %vm502
    %v504 = vsel %vm503, %v496, %v500
    %v505 = vand.u32 2147483647, %v258
    %vm506 = vcmp.eq.f32.partialorder %v505, 8.507059e+37
    %v507 = vand.u32 %v258, 2147483648
    %v508 = vor.u32 1.1754944e-38, %v507
    %v509 = vsel %vm506, %v508, %v504
    %v510 = vmul.f32 %v322, %v509
    %v511 = vrcp.pop %v260
    %v512 = vmul.f32 %v260, %v511
    %v513 = vsub.f32 1.0, %v512
    %v514 = vmul.f32 %v511, %v513
    %v515 = vadd.f32 %v511, %v514
    %vm516 = vweird.f32 %v260
    %vm517 = vweird.f32 %v511
    %vm518 = vmor %vm516, %vm517
    %v519 = vsel %vm518, %v511, %v515
    %v520 = vand.u32 2147483647, %v260
    %vm521 = vcmp.eq.f32.partialorder %v520, 8.507059e+37
    %v522 = vand.u32 %v260, 2147483648
    %v523 = vor.u32 1.1754944e-38, %v522
    %v524 = vsel %vm521, %v523, %v519
    %v525 = vmul.f32 %v324, %v524
    %v526 = vrcp.pop %v262
    %v527 = vmul.f32 %v262, %v526
    %v528 = vsub.f32 1.0, %v527
    %v529 = vmul.f32 %v526, %v528
    %v530 = vadd.f32 %v526, %v529
    %vm531 = vweird.f32 %v262
    %vm532 = vweird.f32 %v526
    %vm533 = vmor %vm531, %vm532
    %v534 = vsel %vm533, %v526, %v530
    %v535 = vand.u32 2147483647, %v262
    %vm536 = vcmp.eq.f32.partialorder %v535, 8.507059e+37
    %v537 = vand.u32 %v262, 2147483648
    %v538 = vor.u32 1.1754944e-38, %v537
    %v539 = vsel %vm536, %v538, %v534
    %v540 = vmul.f32 %v326, %v539
    %v541 = vrcp.pop %v264
    %v542 = vmul.f32 %v264, %v541
    %v543 = vsub.f32 1.0, %v542
    %v544 = vmul.f32 %v541, %v543
    %v545 = vadd.f32 %v541, %v544
    %vm546 = vweird.f32 %v264
    %vm547 = vweird.f32 %v541
    %vm548 = vmor %vm546, %vm547
    %v549 = vsel %vm548, %v541, %v545
    %v550 = vand.u32 2147483647, %v264
    %vm551 = vcmp.eq.f32.partialorder %v550, 8.507059e+37
    %v552 = vand.u32 %v264, 2147483648
    %v553 = vor.u32 1.1754944e-38, %v552
    %v554 = vsel %vm551, %v553, %v549
    %v555 = vmul.f32 %v328, %v554
    %v556 = vrcp.pop %v266
    %v557 = vmul.f32 %v266, %v556
    %v558 = vsub.f32 1.0, %v557
    %v559 = vmul.f32 %v556, %v558
    %v560 = vadd.f32 %v556, %v559
    %vm561 = vweird.f32 %v266
    %vm562 = vweird.f32 %v556
    %vm563 = vmor %vm561, %vm562
    %v564 = vsel %vm563, %v556, %v560
    %v565 = vand.u32 2147483647, %v266
    %vm566 = vcmp.eq.f32.partialorder %v565, 8.507059e+37
    %v567 = vand.u32 %v266, 2147483648
    %v568 = vor.u32 1.1754944e-38, %v567
    %v569 = vsel %vm566, %v568, %v564
    %v570 = vmul.f32 %v330, %v569
    %vm571 = vcmask 7168
    %v572 = vsel %vm571, %v345, 0.0
    %v573 = vsel %vm571, %v360, 0.0
    %v574 = vadd.f32 %v572, %v573
    %v575 = vsel %vm571, %v375, 0.0
    %v576 = vadd.f32 %v574, %v575
    %v577 = vsel %vm571, %v390, 0.0
    %v578 = vadd.f32 %v576, %v577
    %v579 = vsel %vm571, %v405, 0.0
    %v580 = vadd.f32 %v578, %v579
    %v581 = vsel %vm571, %v420, 0.0
    %v582 = vadd.f32 %v580, %v581
    %v583 = vsel %vm571, %v435, 0.0
    %v584 = vadd.f32 %v582, %v583
    %v585 = vsel %vm571, %v450, 0.0
    %v586 = vadd.f32 %v584, %v585
    %v587 = vsel %vm571, %v465, 0.0
    %v588 = vadd.f32 %v586, %v587
    %v589 = vsel %vm571, %v480, 0.0
    %v590 = vadd.f32 %v588, %v589
    %v591 = vsel %vm571, %v495, 0.0
    %v592 = vadd.f32 %v590, %v591
    %v593 = vsel %vm571, %v510, 0.0
    %v594 = vadd.f32 %v592, %v593
    %v595 = vsel %vm571, %v525, 0.0
    %v596 = vadd.f32 %v594, %v595
    %v597 = vsel %vm571, %v540, 0.0
    %v598 = vadd.f32 %v596, %v597
    %v599 = vsel %vm571, %v555, 0.0
    %v600 = vadd.f32 %v598, %v599
    %v601 = vsel %vm571, %v570, 0.0
    %v602 = vadd.f32 %v600, %v601
    %603 = vadd.xlane.f32.xlu0 %v602
    %v604 = vpop.xlane.xlu0 %603
    %v605 = vrot.slane %v604, 4
    %v606 = vadd.f32 %v604, %v605
    %v607 = vrot.slane %v606, 2
    %v608 = vadd.f32 %v606, %v607
    %v609 = vrot.slane %v608, 1
    %v610 = vadd.f32 %v608, %v609
    %s611 = vtos %v610
    %s612 = sld [smem:[#allocation2]]
    %s613 = ssub.f32 %s612, %s611
    %v614 = vrcp.pop 128.0
    %v615 = vmul.f32 128.0, %v614
    %v616 = vsub.f32 1.0, %v615
    %v617 = vmul.f32 %v614, %v616
    %v618 = vadd.f32 %v614, %v617
    %vm619 = vweird.f32 %v614
    %v620 = vsel %vm619, %v614, %v618
    %s621 = vtos %v620
    %s622 = smul.f32 %s613, %s621
    %s623 = scalar_lea.smem [#allocation6], 0
    %624 = sst [smem:[%s623]] %s622
    %v625 = vld [vmem:[%s3] sm:$0xff]
    %v626 = vld [vmem:[%s4] sm:$0xff]
    %v627 = vadd.f32 %v625, %v626
    %v629 = vsel %vm41, %v627, 0
    %631 = vmatpush.xpose.msra.mxu0 %v88
    %632 = vmatpush.xpose.msra.mxu0 %v85
    %633 = vmatpush.xpose.msra.mxu0 %v82
    %634 = vmatpush.xpose.msra.mxu0 %v79
    %635 = vmatpush.xpose.msra.mxu0 %v76
    %636 = vmatpush.xpose.msra.mxu0 %v73
    %637 = vmatpush.xpose.msra.mxu0 %v70
    %638 = vmatpush.xpose.msra.mxu0 %v67
    %639 = vmatpush.xpose.msra.mxu0 %v64
    %640 = vmatpush.xpose.msra.mxu0 %v61
    %641 = vmatpush.xpose.msra.mxu0 %v58
    %642 = vmatpush.xpose.msra.mxu0 %v55
    %643 = vmatpush.xpose.msra.mxu0 %v52
    %644 = vmatpush.xpose.msra.mxu0 %v49
    %645 = vmatpush.xpose.msra.mxu0 %v46
    %646 = vmatpush.xpose.msra.mxu0 %v43
    %647 = vmatmul.f32.gmra.mxu0 %v629
    %v648 = vpop.f32.mrf.mxu0
    %v649 = vadd.f32 0.0, %v648
    %650 = vdwg.mxu0
    %651 = vst [vmem:[#allocation3] sm:$0xff] %v649
    %652 = vst [vmem:[#allocation3 + $0x8] sm:$0xff] %v649
    %653 = vst [vmem:[#allocation3 + $0x10] sm:$0xff] %v649
    %654 = vst [vmem:[#allocation3 + $0x18] sm:$0xff] %v649
    // Predicated region
    $region22: #{tpu_custom_call.1} parent=1 // pred_check
      _
    $region23: #{tpu_custom_call.1} parent=1 // pred_check_branch
      %656 = sbr.rel (0) target = $region25
    $region24: #{tpu_custom_call.1} parent=1 // pred_region
      %658 = vsyncadd [#allocation4], 0
      %s660 = sshll.u32 [#allocation3], 4
      %s661 = int_to_ptr.vmem [resolvable:$true] %s660
      %s662 = sshll.u32 %s5, 4
      %s663 = int_to_ptr.hbm [resolvable:$true] %s662
      %665 = dma.vmem_to_hbm [thread:$0]  %s661, 512, %s663, [#allocation4]
    $region25: #{tpu_custom_call.1} parent=1 // pred_fallthru
      _
    // Predicated region
    $region26: #{tpu_custom_call.1} parent=1 // pred_check
      _
    $region27: #{tpu_custom_call.1} parent=1 // pred_check_branch
      %667 = sbr.rel (0) target = $region29
    $region28: #{tpu_custom_call.1} parent=1 // pred_region
      %669 = vsyncadd [#allocation5], 0
      %s671 = sshll.u32 %s6, 4
      %s672 = int_to_ptr.hbm [resolvable:$true] %s671
      %674 = dma.smem_to_hbm [#allocation6], 16, %s672, [#allocation5]
    $region29: #{tpu_custom_call.1} parent=1 // pred_fallthru
      _
    // Predicated region
    $region30: #{tpu_custom_call.1} parent=1 // pred_check
      _
    $region31: #{tpu_custom_call.1} parent=1 // pred_check_branch
      %676 = sbr.rel (0) target = $region33
    $region32: #{tpu_custom_call.1} parent=1 // pred_region
      %678 = dma.done [#allocation4], 512
    $region33: #{tpu_custom_call.1} parent=1 // pred_fallthru
      _
    // Predicated region
    $region34: #{tpu_custom_call.1} parent=1 // pred_check
      _
    $region35: #{tpu_custom_call.1} parent=1 // pred_check_branch
      %680 = sbr.rel (0) target = $region37
    $region36: #{tpu_custom_call.1} parent=1 // pred_region
      %682 = dma.done [#allocation5], 16
    $region37: #{tpu_custom_call.1} parent=1 // pred_fallthru
      _
    %683 = sfence
    %684 = vsyncpa [#allocation4], 1
    %685 = vsyncpa [#allocation5], 1

</llo_original>
